<compile_context>
chip_gen: v5e
topology: v5e:2x2
jax: 0.10.0
libtpu: 0.0.40
codegen_flags: <defaults>
</compile_context>

<pallas_src>
import jax
import jax.numpy as jnp
from jax import lax
from jax.experimental import pallas as pl
from jax.experimental.pallas import tpu as pltpu


# contract the last (H) axis of both operands: q @ k^T without a transpose
_TRANS_B_DIMS = (((1,), (1,)), ((), ()))


def _layernorm_f32(x, eps=1e-6):
    mu = jnp.mean(x, axis=-1, keepdims=True)
    xc = x - mu
    var = jnp.mean(xc * xc, axis=-1, keepdims=True)
    return xc * lax.rsqrt(var + eps)


def domain_classifier_kernel(
    emb_ref,    # (1, S, H)  bf16 : token embeddings for this example
    mask_ref,   # (1, 1, S)  f32  : attention mask (1 keep / 0 pad)
    wqkv_ref,   # (H, 3H)    bf16 : [wq/sqrt(H) | wk | wv@wo] fused projection
    w1_ref,     # (H, F)     bf16
    w2_ref,     # (F, H)     bf16
    fcw_ref,    # (H, Lp)    bf16 : fc weight, zero-padded to lane width
    bias_ref,   # (1, Lp+F+H) f32 : [fc_b(pad=-1e9) | b1 | b2]
    out_ref,    # (1, 1, Lp) f32  : padded softmax class probabilities
):
    H = wqkv_ref.shape[0]
    F = w1_ref.shape[1]
    Lp = fcw_ref.shape[1]

    x = emb_ref[0]                                             # (S, H) bf16

    # --- fused q / k / (v@wo) projection: one MXU push -----------------------
    qkv = jnp.dot(x, wqkv_ref[...],
                  preferred_element_type=jnp.float32)          # (S, 3H) f32
    q_cls = qkv[0:1, 0:H]           # (1, H) CLS query, pre-scaled by 1/sqrt(H)
    k = qkv[:, H:2 * H]             # (S, H)
    vo = qkv[:, 2 * H:3 * H]        # (S, H) value, output projection folded in

    # --- masked attention for the CLS query only -----------------------------
    scores = lax.dot_general(q_cls.astype(jnp.bfloat16), k.astype(jnp.bfloat16),
                             _TRANS_B_DIMS,
                             preferred_element_type=jnp.float32)   # (1, S)
    scores = scores + (mask_ref[0] - 1.0) * 1e9                    # padding mask

    m = jnp.max(scores, axis=-1, keepdims=True)
    e = jnp.exp(scores - m)
    attn = e * pl.reciprocal(jnp.sum(e, axis=-1, keepdims=True), approx=True)

    ctx = jnp.dot(attn.astype(jnp.bfloat16), vo.astype(jnp.bfloat16),
                  preferred_element_type=jnp.float32)              # (1, H)
    x_cls = x[0:1, :].astype(jnp.float32)                          # residual
    h1 = _layernorm_f32(x_cls + ctx)                               # (1, H) f32

    # --- feed-forward (CLS row only) -----------------------------------------
    fcb = bias_ref[:, 0:Lp]
    b1 = bias_ref[:, Lp:Lp + F]
    b2 = bias_ref[:, Lp + F:Lp + F + H]

    ff = jnp.dot(h1.astype(jnp.bfloat16), w1_ref[...],
                 preferred_element_type=jnp.float32) + b1          # (1, F)
    ff = jax.nn.gelu(ff, approximate=True)                         # f32 (EUP)
    ff = jnp.dot(ff.astype(jnp.bfloat16), w2_ref[...],
                 preferred_element_type=jnp.float32) + b2          # (1, H)
    feat = _layernorm_f32(h1 + ff)            # == last_hidden_state[:, 0, :]

    # --- dropout: identity at inference (torch.no_grad / eval) ---------------
    # --- classifier head + softmax over labels (lane-dense padded store) -----
    logits = jnp.dot(feat.astype(jnp.bfloat16), fcw_ref[...],
                     preferred_element_type=jnp.float32) + fcb     # (1, Lp)
    lm = jnp.max(logits, axis=-1, keepdims=True)
    le = jnp.exp(logits - lm)                 # padded lanes -> exp(-1e9) == 0
    out_ref[0] = le / jnp.sum(le, axis=-1, keepdims=True)   # exact normalize


def prepare_inference_params(params, lane=128):
    """One-time host-side prep: fold 1/sqrt(H) into wq and wo into wv, fuse
    q/k/v into one (H,3H) weight, pad fc to lane width, pack biases, cast MXU
    operands to bf16 (accumulation stays f32 in the kernel)."""
    H = params["wq"].shape[0]
    L = params["fc_w"].shape[1]
    Lp = ((L + lane - 1) // lane) * lane
    scale = 1.0 / jnp.sqrt(jnp.float32(H))

    w_qkv = jnp.concatenate(
        [params["wq"] * scale, params["wk"], params["wv"] @ params["wo"]],
        axis=1)                                                    # (H, 3H)
    fc_w = jnp.zeros((H, Lp), jnp.float32).at[:, :L].set(params["fc_w"])
    fc_b = jnp.full((1, Lp), -1e9, jnp.float32).at[:, :L].set(params["fc_b"])
    bias = jnp.concatenate([fc_b, params["b1"], params["b2"]], axis=1)

    bf = lambda a: a.astype(jnp.bfloat16)
    return {
        "emb":   bf(params["emb"]),     # bf16 table: gather bf16 directly
        "w_qkv": bf(w_qkv),
        "w1":    bf(params["w1"]),
        "w2":    bf(params["w2"]),
        "fc_w":  bf(fc_w),
        "bias":  bias.astype(jnp.float32),
        "num_labels": L,
    }


def domain_classifier_forward(input_ids, attention_mask, iparams):
    """input_ids: (B, S) int32, attention_mask: (B, S) -> (B, L) probabilities."""
    B, S = input_ids.shape
    emb_table = iparams["emb"]
    H = emb_table.shape[-1]
    F = iparams["w1"].shape[-1]
    Lp = iparams["fc_w"].shape[-1]
    L = iparams["num_labels"]

    # bf16 gather straight from the bf16 table (no f32 slab round-trip).
    emb = jnp.take(emb_table, input_ids, axis=0)                # (B, S, H) bf16
    mask = attention_mask.astype(jnp.float32).reshape(B, 1, S)  # (B, 1, S) f32

    wspec = lambda shape: pl.BlockSpec(shape, lambda b: (0,) * len(shape))

    probs_pad = pl.pallas_call(
        domain_classifier_kernel,
        out_shape=jax.ShapeDtypeStruct((B, 1, Lp), jnp.float32),
        grid_spec=pltpu.PrefetchScalarGridSpec(
            num_scalar_prefetch=0,
            grid=(B,),                             # one example per grid step
            in_specs=[
                pl.BlockSpec((1, S, H), lambda b: (b, 0, 0)),   # embeddings
                pl.BlockSpec((1, 1, S), lambda b: (b, 0, 0)),   # padding mask
                wspec((H, 3 * H)),                              # fused qkv(+o)
                wspec((H, F)),
                wspec((F, H)),
                wspec((H, Lp)),
                wspec((1, Lp + F + H)),                         # packed biases
            ],
            out_specs=pl.BlockSpec((1, 1, Lp), lambda b: (b, 0, 0)),
        ),
        compiler_params=pltpu.CompilerParams(
            dimension_semantics=("parallel",)),    # both TCs on v7x
    )(
        emb, mask,
        iparams["w_qkv"], iparams["w1"], iparams["w2"],
        iparams["fc_w"], iparams["bias"],
    )
    return probs_pad[:, 0, :L]


def reference_forward(input_ids, attention_mask, iparams):
    """Pure-JAX f32 reference (full-sequence encoder, per example), using the
    same prepared (bf16-rounded, fused) weights as the kernel."""
    B, S = input_ids.shape
    f32 = lambda a: a.astype(jnp.float32)
    emb = f32(jnp.take(iparams["emb"], input_ids, axis=0))       # (B, S, H)
    H = emb.shape[-1]
    wqkv = f32(iparams["w_qkv"])
    wq, wk, wvo = wqkv[:, :H], wqkv[:, H:2 * H], wqkv[:, 2 * H:]
    w1, w2, fcw = f32(iparams["w1"]), f32(iparams["w2"]), f32(iparams["fc_w"])
    F = w1.shape[1]
    Lp = fcw.shape[1]
    fcb = iparams["bias"][:, 0:Lp]
    b1 = iparams["bias"][:, Lp:Lp + F]
    b2 = iparams["bias"][:, Lp + F:Lp + F + H]
    L = iparams["num_labels"]

    def _ln(x, eps=1e-6):
        mu = jnp.mean(x, -1, keepdims=True)
        var = jnp.mean((x - mu) ** 2, -1, keepdims=True)
        return (x - mu) * lax.rsqrt(var + eps)

    def one(x, m):                       # x: (S, H), m: (S,)
        q = x @ wq                       # wq already carries 1/sqrt(H)
        k = x @ wk
        vo = x @ wvo                     # value with output projection folded
        scores = q @ k.T + (m[None, :] - 1.0) * 1e9
        attn = jax.nn.softmax(scores, axis=-1)
        h1 = _ln(x + attn @ vo)
        ff = jax.nn.gelu(h1 @ w1 + b1, approximate=True)
        feat = _ln(h1 + ff @ w2 + b2)
        logits = feat[0] @ fcw + fcb[0]
        return jax.nn.softmax(logits, axis=-1)[:L]

    return jnp.stack([one(emb[b], attention_mask[b].astype(jnp.float32))
                      for b in range(B)])


def init_params(key, vocab=128, H=32, F=64, L=5):
    ks = jax.random.split(key, 8)
    n = lambda k, shape, s: (jax.random.normal(k, shape, jnp.float32) * s)
    return {
        "emb":  n(ks[0], (vocab, H), 0.02),
        "wq":   n(ks[1], (H, H), 1.0 / jnp.sqrt(H)),
        "wk":   n(ks[2], (H, H), 1.0 / jnp.sqrt(H)),
        "wv":   n(ks[3], (H, H), 1.0 / jnp.sqrt(H)),
        "wo":   n(ks[4], (H, H), 1.0 / jnp.sqrt(H)),
        "w1":   n(ks[5], (H, F), 1.0 / jnp.sqrt(H)),
        "b1":   jnp.zeros((1, F), jnp.float32),
        "w2":   n(ks[6], (F, H), 1.0 / jnp.sqrt(F)),
        "b2":   jnp.zeros((1, H), jnp.float32),
        "fc_w": n(ks[7], (H, L), 1.0 / jnp.sqrt(H)),
        "fc_b": jnp.zeros((1, L), jnp.float32),
    }


if __name__ == "__main__":
    key = jax.random.PRNGKey(0)
    k_param, k_ids = jax.random.split(key)

    B, S, H, F, V, L = 2, 8, 32, 64, 128, 5
    params = init_params(k_param, vocab=V, H=H, F=F, L=L)
    iparams = prepare_inference_params(params)   # one-time fuse/fold/pad/bf16

    input_ids = jax.random.randint(k_ids, (B, S), 0, V, dtype=jnp.int32)
    # second example has two padded (masked-out) positions
    attention_mask = jnp.array(
        [[1, 1, 1, 1, 1, 1, 1, 1],
         [1, 1, 1, 1, 1, 1, 0, 0]], dtype=jnp.float32)

    probs = domain_classifier_forward(input_ids, attention_mask, iparams)
    probs = jax.block_until_ready(probs)

    assert probs.shape == (B, L)
    assert bool(jnp.all(jnp.isfinite(probs)))
    # rows of a softmax must sum to 1 (padded logits vanish under exp)
    assert bool(jnp.allclose(jnp.sum(probs, axis=1), 1.0, atol=1e-5))

    # cross-check against pure-JAX f32 reference (bf16-activation tolerance)
    ref = reference_forward(input_ids, attention_mask, iparams)
    assert bool(jnp.allclose(probs, ref, atol=3e-2))

    print("KERNEL_OK")
</pallas_src>

<mosaic_0001>
module attributes {stable_mosaic.version = 11 : i64} {
  func.func @domain_classifier_kernel(%arg0: i32, %arg1: memref<1x8x32xbf16, #tpu.memory_space<vmem>>, %arg2: memref<1x1x8xf32, #tpu.memory_space<vmem>>, %arg3: memref<32x96xbf16, #tpu.memory_space<vmem>>, %arg4: memref<32x64xbf16, #tpu.memory_space<vmem>>, %arg5: memref<64x32xbf16, #tpu.memory_space<vmem>>, %arg6: memref<32x128xbf16, #tpu.memory_space<vmem>>, %arg7: memref<1x224xf32, #tpu.memory_space<vmem>>, %arg8: memref<1x1x128xf32, #tpu.memory_space<vmem>>) attributes {dimension_semantics = [#tpu.dimension_semantics<parallel>], iteration_bounds = array<i64: 2>, scalar_prefetch = 0 : i64, scratch_operands = 0 : i64, tpu.core_type = #tpu.core_type<tc>, window_params = [{transform_indices = @transform_0, window_bounds = array<i64: 1, 8, 32>}, {transform_indices = @transform_1, window_bounds = array<i64: 1, 1, 8>}, {pipeline_mode = #tpu.pipeline_mode<synchronous>, transform_indices = @transform_2, window_bounds = array<i64: 32, 96>}, {pipeline_mode = #tpu.pipeline_mode<synchronous>, transform_indices = @transform_3, window_bounds = array<i64: 32, 64>}, {pipeline_mode = #tpu.pipeline_mode<synchronous>, transform_indices = @transform_4, window_bounds = array<i64: 64, 32>}, {pipeline_mode = #tpu.pipeline_mode<synchronous>, transform_indices = @transform_5, window_bounds = array<i64: 32, 128>}, {pipeline_mode = #tpu.pipeline_mode<synchronous>, transform_indices = @transform_6, window_bounds = array<i64: 1, 224>}, {transform_indices = @transform_7, window_bounds = array<i64: 1, 1, 128>}]} {
    %c0 = arith.constant 0 : index
    %c0_0 = arith.constant 0 : index
    %c0_1 = arith.constant 0 : index
    %0 = vector.load %arg1[%c0, %c0_0, %c0_1] : memref<1x8x32xbf16, #tpu.memory_space<vmem>>, vector<1x8x32xbf16>
    %1 = vector.shape_cast %0 : vector<1x8x32xbf16> to vector<8x32xbf16>
    %c0_2 = arith.constant 0 : index
    %c0_3 = arith.constant 0 : index
    %2 = vector.load %arg3[%c0_2, %c0_3] : memref<32x96xbf16, #tpu.memory_space<vmem>>, vector<32x96xbf16>
    %cst = arith.constant dense<0.000000e+00> : vector<8x96xf32>
    %3 = tpu.matmul %1, %2, %cst {dimension_numbers = #tpu.dot_dimension_numbers<[1], [0], [0], [1], [0, 0, 1, 1], [], []>} : vector<8x32xbf16>, vector<32x96xbf16>, vector<8x96xf32> -> vector<8x96xf32>
    %4 = vector.extract_strided_slice %3 {offsets = [0, 0], sizes = [1, 32], strides = [1, 1]} : vector<8x96xf32> to vector<1x32xf32>
    %5 = vector.extract_strided_slice %3 {offsets = [0, 32], sizes = [8, 32], strides = [1, 1]} : vector<8x96xf32> to vector<8x32xf32>
    %6 = vector.extract_strided_slice %3 {offsets = [0, 64], sizes = [8, 32], strides = [1, 1]} : vector<8x96xf32> to vector<8x32xf32>
    %7 = arith.truncf %4 : vector<1x32xf32> to vector<1x32xbf16>
    %8 = arith.truncf %5 : vector<8x32xf32> to vector<8x32xbf16>
    %cst_4 = arith.constant dense<0.000000e+00> : vector<1x8xf32>
    %9 = tpu.matmul %7, %8, %cst_4 {dimension_numbers = #tpu.dot_dimension_numbers<[1], [1], [0], [0], [0, 0, 1, 0], [], []>} : vector<1x32xbf16>, vector<8x32xbf16>, vector<1x8xf32> -> vector<1x8xf32>
    %c0_5 = arith.constant 0 : index
    %c0_6 = arith.constant 0 : index
    %c0_7 = arith.constant 0 : index
    %10 = vector.load %arg2[%c0_5, %c0_6, %c0_7] : memref<1x1x8xf32, #tpu.memory_space<vmem>>, vector<1x1x8xf32>
    %11 = vector.shape_cast %10 : vector<1x1x8xf32> to vector<1x8xf32>
    %cst_8 = arith.constant 1.000000e+00 : f32
    %12 = vector.broadcast %cst_8 : f32 to vector<1x8xf32>
    %13 = arith.subf %11, %12 : vector<1x8xf32>
    %cst_9 = arith.constant 1.000000e+09 : f32
    %14 = vector.broadcast %cst_9 : f32 to vector<1x8xf32>
    %15 = arith.mulf %13, %14 : vector<1x8xf32>
    %16 = arith.addf %9, %15 : vector<1x8xf32>
    %cst_10 = arith.constant dense<0xFF800000> : vector<1xf32>
    %17 = vector.multi_reduction <maximumf>, %16, %cst_10 [1] : vector<1x8xf32> to vector<1xf32>
    %18 = vector.shape_cast %17 : vector<1xf32> to vector<1x1xf32>
    %19 = vector.broadcast %18 : vector<1x1xf32> to vector<1x8xf32>
    %20 = arith.subf %16, %19 : vector<1x8xf32>
    %21 = math.exp %20 : vector<1x8xf32>
    %cst_11 = arith.constant dense<0.000000e+00> : vector<1xf32>
    %22 = vector.multi_reduction <add>, %21, %cst_11 [1] : vector<1x8xf32> to vector<1xf32>
    %23 = vector.shape_cast %22 : vector<1xf32> to vector<1x1xf32>
    %24 = tpu.reciprocal %23 {approx = true} : vector<1x1xf32> -> vector<1x1xf32>
    %25 = vector.broadcast %24 : vector<1x1xf32> to vector<1x8xf32>
    %26 = arith.mulf %21, %25 : vector<1x8xf32>
    %27 = arith.truncf %26 : vector<1x8xf32> to vector<1x8xbf16>
    %28 = arith.truncf %6 : vector<8x32xf32> to vector<8x32xbf16>
    %cst_12 = arith.constant dense<0.000000e+00> : vector<1x32xf32>
    %29 = tpu.matmul %27, %28, %cst_12 {dimension_numbers = #tpu.dot_dimension_numbers<[1], [0], [0], [1], [0, 0, 1, 1], [], []>} : vector<1x8xbf16>, vector<8x32xbf16>, vector<1x32xf32> -> vector<1x32xf32>
    %30 = vector.extract_strided_slice %1 {offsets = [0, 0], sizes = [1, 32], strides = [1, 1]} : vector<8x32xbf16> to vector<1x32xbf16>
    %31 = arith.extf %30 : vector<1x32xbf16> to vector<1x32xf32>
    %32 = arith.addf %31, %29 : vector<1x32xf32>
    %cst_13 = arith.constant dense<0.000000e+00> : vector<1xf32>
    %33 = vector.multi_reduction <add>, %32, %cst_13 [1] : vector<1x32xf32> to vector<1xf32>
    %34 = vector.shape_cast %33 : vector<1xf32> to vector<1x1xf32>
    %cst_14 = arith.constant 3.200000e+01 : f32
    %35 = vector.broadcast %cst_14 : f32 to vector<1x1xf32>
    %36 = arith.divf %34, %35 : vector<1x1xf32>
    %37 = vector.broadcast %36 : vector<1x1xf32> to vector<1x32xf32>
    %38 = arith.subf %32, %37 : vector<1x32xf32>
    %39 = arith.mulf %38, %38 : vector<1x32xf32>
    %cst_15 = arith.constant dense<0.000000e+00> : vector<1xf32>
    %40 = vector.multi_reduction <add>, %39, %cst_15 [1] : vector<1x32xf32> to vector<1xf32>
    %41 = vector.shape_cast %40 : vector<1xf32> to vector<1x1xf32>
    %cst_16 = arith.constant 3.200000e+01 : f32
    %42 = vector.broadcast %cst_16 : f32 to vector<1x1xf32>
    %43 = arith.divf %41, %42 : vector<1x1xf32>
    %cst_17 = arith.constant 9.99999997E-7 : f32
    %44 = vector.broadcast %cst_17 : f32 to vector<1x1xf32>
    %45 = arith.addf %43, %44 : vector<1x1xf32>
    %46 = math.rsqrt %45 : vector<1x1xf32>
    %47 = vector.broadcast %46 : vector<1x1xf32> to vector<1x32xf32>
    %48 = arith.mulf %38, %47 : vector<1x32xf32>
    %c0_18 = arith.constant 0 : index
    %c0_19 = arith.constant 0 : index
    %49 = vector.load %arg7[%c0_18, %c0_19] : memref<1x224xf32, #tpu.memory_space<vmem>>, vector<1x128xf32>
    %c0_20 = arith.constant 0 : index
    %c128 = arith.constant 128 : index
    %50 = vector.load %arg7[%c0_20, %c128] : memref<1x224xf32, #tpu.memory_space<vmem>>, vector<1x64xf32>
    %c0_21 = arith.constant 0 : index
    %c192 = arith.constant 192 : index
    %51 = vector.load %arg7[%c0_21, %c192] : memref<1x224xf32, #tpu.memory_space<vmem>>, vector<1x32xf32>
    %52 = arith.truncf %48 : vector<1x32xf32> to vector<1x32xbf16>
    %c0_22 = arith.constant 0 : index
    %c0_23 = arith.constant 0 : index
    %53 = vector.load %arg4[%c0_22, %c0_23] : memref<32x64xbf16, #tpu.memory_space<vmem>>, vector<32x64xbf16>
    %cst_24 = arith.constant dense<0.000000e+00> : vector<1x64xf32>
    %54 = tpu.matmul %52, %53, %cst_24 {dimension_numbers = #tpu.dot_dimension_numbers<[1], [0], [0], [1], [0, 0, 1, 1], [], []>} : vector<1x32xbf16>, vector<32x64xbf16>, vector<1x64xf32> -> vector<1x64xf32>
    %55 = arith.addf %54, %50 : vector<1x64xf32>
    %56 = arith.mulf %55, %55 : vector<1x64xf32>
    %57 = arith.mulf %55, %56 : vector<1x64xf32>
    %cst_25 = arith.constant 4.471500e-02 : f32
    %58 = vector.broadcast %cst_25 : f32 to vector<1x64xf32>
    %59 = arith.mulf %58, %57 : vector<1x64xf32>
    %60 = arith.addf %55, %59 : vector<1x64xf32>
    %cst_26 = arith.constant 0.797884583 : f32
    %61 = vector.broadcast %cst_26 : f32 to vector<1x64xf32>
    %62 = arith.mulf %61, %60 : vector<1x64xf32>
    %63 = math.tanh %62 : vector<1x64xf32>
    %cst_27 = arith.constant 1.000000e+00 : f32
    %64 = vector.broadcast %cst_27 : f32 to vector<1x64xf32>
    %65 = arith.addf %64, %63 : vector<1x64xf32>
    %cst_28 = arith.constant 5.000000e-01 : f32
    %66 = vector.broadcast %cst_28 : f32 to vector<1x64xf32>
    %67 = arith.mulf %66, %65 : vector<1x64xf32>
    %68 = arith.mulf %55, %67 : vector<1x64xf32>
    %69 = arith.truncf %68 : vector<1x64xf32> to vector<1x64xbf16>
    %c0_29 = arith.constant 0 : index
    %c0_30 = arith.constant 0 : index
    %70 = vector.load %arg5[%c0_29, %c0_30] : memref<64x32xbf16, #tpu.memory_space<vmem>>, vector<64x32xbf16>
    %cst_31 = arith.constant dense<0.000000e+00> : vector<1x32xf32>
    %71 = tpu.matmul %69, %70, %cst_31 {dimension_numbers = #tpu.dot_dimension_numbers<[1], [0], [0], [1], [0, 0, 1, 1], [], []>} : vector<1x64xbf16>, vector<64x32xbf16>, vector<1x32xf32> -> vector<1x32xf32>
    %72 = arith.addf %71, %51 : vector<1x32xf32>
    %73 = arith.addf %48, %72 : vector<1x32xf32>
    %cst_32 = arith.constant dense<0.000000e+00> : vector<1xf32>
    %74 = vector.multi_reduction <add>, %73, %cst_32 [1] : vector<1x32xf32> to vector<1xf32>
    %75 = vector.shape_cast %74 : vector<1xf32> to vector<1x1xf32>
    %cst_33 = arith.constant 3.200000e+01 : f32
    %76 = vector.broadcast %cst_33 : f32 to vector<1x1xf32>
    %77 = arith.divf %75, %76 : vector<1x1xf32>
    %78 = vector.broadcast %77 : vector<1x1xf32> to vector<1x32xf32>
    %79 = arith.subf %73, %78 : vector<1x32xf32>
    %80 = arith.mulf %79, %79 : vector<1x32xf32>
    %cst_34 = arith.constant dense<0.000000e+00> : vector<1xf32>
    %81 = vector.multi_reduction <add>, %80, %cst_34 [1] : vector<1x32xf32> to vector<1xf32>
    %82 = vector.shape_cast %81 : vector<1xf32> to vector<1x1xf32>
    %cst_35 = arith.constant 3.200000e+01 : f32
    %83 = vector.broadcast %cst_35 : f32 to vector<1x1xf32>
    %84 = arith.divf %82, %83 : vector<1x1xf32>
    %cst_36 = arith.constant 9.99999997E-7 : f32
    %85 = vector.broadcast %cst_36 : f32 to vector<1x1xf32>
    %86 = arith.addf %84, %85 : vector<1x1xf32>
    %87 = math.rsqrt %86 : vector<1x1xf32>
    %88 = vector.broadcast %87 : vector<1x1xf32> to vector<1x32xf32>
    %89 = arith.mulf %79, %88 : vector<1x32xf32>
    %90 = arith.truncf %89 : vector<1x32xf32> to vector<1x32xbf16>
    %c0_37 = arith.constant 0 : index
    %c0_38 = arith.constant 0 : index
    %91 = vector.load %arg6[%c0_37, %c0_38] : memref<32x128xbf16, #tpu.memory_space<vmem>>, vector<32x128xbf16>
    %cst_39 = arith.constant dense<0.000000e+00> : vector<1x128xf32>
    %92 = tpu.matmul %90, %91, %cst_39 {dimension_numbers = #tpu.dot_dimension_numbers<[1], [0], [0], [1], [0, 0, 1, 1], [], []>} : vector<1x32xbf16>, vector<32x128xbf16>, vector<1x128xf32> -> vector<1x128xf32>
    %93 = arith.addf %92, %49 : vector<1x128xf32>
    %cst_40 = arith.constant dense<0xFF800000> : vector<1xf32>
    %94 = vector.multi_reduction <maximumf>, %93, %cst_40 [1] : vector<1x128xf32> to vector<1xf32>
    %95 = vector.shape_cast %94 : vector<1xf32> to vector<1x1xf32>
    %96 = vector.broadcast %95 : vector<1x1xf32> to vector<1x128xf32>
    %97 = arith.subf %93, %96 : vector<1x128xf32>
    %98 = math.exp %97 : vector<1x128xf32>
    %cst_41 = arith.constant dense<0.000000e+00> : vector<1xf32>
    %99 = vector.multi_reduction <add>, %98, %cst_41 [1] : vector<1x128xf32> to vector<1xf32>
    %100 = vector.shape_cast %99 : vector<1xf32> to vector<1x1xf32>
    %101 = vector.broadcast %100 : vector<1x1xf32> to vector<1x128xf32>
    %102 = arith.divf %98, %101 : vector<1x128xf32>
    %c0_42 = arith.constant 0 : index
    %c0_43 = arith.constant 0 : index
    %c0_44 = arith.constant 0 : index
    %103 = vector.load %arg8[%c0_42, %c0_43, %c0_44] : memref<1x1x128xf32, #tpu.memory_space<vmem>>, vector<1x1x128xf32>
    %104 = vector.shape_cast %103 : vector<1x1x128xf32> to vector<1x128xf32>
    %105 = vector.shape_cast %102 : vector<1x128xf32> to vector<1x1x128xf32>
    tpu.vector_store %arg8[%c0_42, %c0_43, %c0_44], %105 {strides = array<i32>} : memref<1x1x128xf32, #tpu.memory_space<vmem>>, vector<1x1x128xf32>,
    return
  }
  func.func @transform_0(%arg0: i32) -> (i32, i32, i32) {
    %c0_i32 = arith.constant 0 : i32
    %c0_i32_0 = arith.constant 0 : i32
    %c0_i32_1 = arith.constant 0 : i32
    return %arg0, %c0_i32, %c0_i32_0 : i32, i32, i32
  }
  func.func @transform_1(%arg0: i32) -> (i32, i32, i32) {
    %c0_i32 = arith.constant 0 : i32
    %c0_i32_0 = arith.constant 0 : i32
    %c0_i32_1 = arith.constant 0 : i32
    return %arg0, %c0_i32, %c0_i32_0 : i32, i32, i32
  }
  func.func @transform_2(%arg0: i32) -> (i32, i32) {
    %c0_i32 = arith.constant 0 : i32
    %c0_i32_0 = arith.constant 0 : i32
    %c0_i32_1 = arith.constant 0 : i32
    return %c0_i32, %c0_i32_0 : i32, i32
  }
  func.func @transform_3(%arg0: i32) -> (i32, i32) {
    %c0_i32 = arith.constant 0 : i32
    %c0_i32_0 = arith.constant 0 : i32
    %c0_i32_1 = arith.constant 0 : i32
    return %c0_i32, %c0_i32_0 : i32, i32
  }
  func.func @transform_4(%arg0: i32) -> (i32, i32) {
    %c0_i32 = arith.constant 0 : i32
    %c0_i32_0 = arith.constant 0 : i32
    %c0_i32_1 = arith.constant 0 : i32
    return %c0_i32, %c0_i32_0 : i32, i32
  }
  func.func @transform_5(%arg0: i32) -> (i32, i32) {
    %c0_i32 = arith.constant 0 : i32
    %c0_i32_0 = arith.constant 0 : i32
    %c0_i32_1 = arith.constant 0 : i32
    return %c0_i32, %c0_i32_0 : i32, i32
  }
  func.func @transform_6(%arg0: i32) -> (i32, i32) {
    %c0_i32 = arith.constant 0 : i32
    %c0_i32_0 = arith.constant 0 : i32
    %c0_i32_1 = arith.constant 0 : i32
    return %c0_i32, %c0_i32_0 : i32, i32
  }
  func.func @transform_7(%arg0: i32) -> (i32, i32, i32) {
    %c0_i32 = arith.constant 0 : i32
    %c0_i32_0 = arith.constant 0 : i32
    %c0_i32_1 = arith.constant 0 : i32
    return %arg0, %c0_i32, %c0_i32_0 : i32, i32, i32
  }
}

</mosaic_0001>

<llo_original>
// kernel: tpu_custom_call.1
$region0: #{tpu_custom_call.1}
  #allocation0 [shape = 'u32[]', space=smem, size = 0x4, offset = 0x4, fixed_abs, tag = 'smem constant byte address 0x4 - core index']
  #allocation1 [shape = 'u32[72,128]{1,0:T(1,128)}', space=vmem, size = 0x9000, scoped, tag = 'internal scratch']
  %s0 = inlined_call_operand.hbm [shape: bf16[2,8,32], index: 0, kind: input, shape index: {}]
  %s1 = inlined_call_operand.hbm [shape: f32[2,1,8], index: 1, kind: input, shape index: {}]
  %s2 = inlined_call_operand.vmem [shape: bf16[32,96], index: 2, kind: input, shape index: {}]
  %s3 = inlined_call_operand.vmem [shape: bf16[32,64], index: 3, kind: input, shape index: {}]
  %s4 = inlined_call_operand.vmem [shape: bf16[64,32], index: 4, kind: input, shape index: {}]
  %s5 = inlined_call_operand.vmem [shape: bf16[32,128], index: 5, kind: input, shape index: {}]
  %s6 = inlined_call_operand.vmem [shape: f32[1,224], index: 6, kind: input, shape index: {}]
  %s7 = inlined_call_operand.hbm [shape: f32[2,1,128], index: 7, kind: output, shape index: {}]
  %s8 = sld [smem:[#allocation0]]
  $region69: #{tpu_custom_call.1} parent=0
    _
  %s10 = ssub.s32 1, %s8
  %s11 = scalar_select 0, %s10, %s8
  $region1: #{tpu_custom_call.1} parent=0
    #allocation2 [shape = 'u8[4096]{0}', space=vmem, size = 0x1000, scoped, tag = 'input window, operand 0']
    #allocation3 [shape = 's32[2]{0}', space=sflag, size = 0x8, scoped, tag = 'scoped memory for tpu_custom_call.1']
    #allocation4 [shape = 's32[2]{0}', space=sflag, size = 0x8, scoped, tag = 'scoped memory for tpu_custom_call.1']
    #allocation5 [shape = 'u8[1024]{0}', space=vmem, size = 0x400, scoped, tag = 'input window, operand 1']
    #allocation6 [shape = 's32[2]{0}', space=sflag, size = 0x8, scoped, tag = 'scoped memory for tpu_custom_call.1']
    #allocation7 [shape = 'u8[1024]{0}', space=vmem, size = 0x400, scoped, tag = 'output window, operand 0']
    %12 = vsyncpa [#allocation3], 0
    %s13 = scalar_lea.sflag [#allocation3], 1
    %14 = vsyncpa %s13, 0
    %15 = vsyncpa [#allocation6], 0
    %s16 = scalar_lea.sflag [#allocation6], 1
    %17 = vsyncpa %s16, 0
    %18 = vsyncpa [#allocation4], 0
    %s19 = scalar_lea.sflag [#allocation4], 1
    %20 = vsyncpa %s19, 0
    loop: start=0, step=1, limit=4
    $region2: #{tpu_custom_call.1} parent=1 // loop_pre_header
      _
    $region3: #{tpu_custom_call.1} parent=1 // loop_header
      %s22 = sphi 0, %s26
      %p23 = scmp.ge.s32.totalorder %s22, 4
      %s32 = sphi 0, %s34
      %s35 = sphi 0, %s32
      %s36 = sphi 0, %s35
      %s52 = sphi 0, %s36
      %s58 = sphi 0, %s60
      %s61 = sphi 0, %s58
      %s62 = sphi 0, %s61
      %s78 = sphi 0, %s62
      %s82 = sphi 0, %s82
      %s84 = sphi 0, %s82
      %s85 = sphi 0, %s84
      %s99 = sphi 0, %s85
      %s103 = sphi 0, %s103
      %s105 = sphi 0, %s103
      %s106 = sphi 0, %s105
      %s120 = sphi 0, %s106
      %s124 = sphi 0, %s124
      %s126 = sphi 0, %s124
      %s127 = sphi 0, %s126
      %s141 = sphi 0, %s127
      %s145 = sphi 0, %s145
      %s147 = sphi 0, %s145
      %s148 = sphi 0, %s147
      %s162 = sphi 0, %s148
      %s166 = sphi 0, %s166
      %s168 = sphi 0, %s166
      %s169 = sphi 0, %s168
      %s183 = sphi 0, %s169
      %s189 = sphi 0, %s191
      %s192 = sphi 0, %s189
      %s193 = sphi 0, %s192
      %s209 = sphi 0, %s193
    $region4: #{tpu_custom_call.1} parent=1 // loop_header_branch
      %25 = sbr.rel (%p23) target = $region8
    $region5: #{tpu_custom_call.1} parent=1 // loop_body
      %s27 = ssub.s32 %s22, 1
      %s28 = ssub.s32 %s22, 2
      %s29 = sadd.s32 %s22, 1
      %s30 = ssub.s32 %s22, %s29
      %p31 = scmp.eq.s32.totalorder %s30, 0
      %s33 = sadd.s32 %s32, 1
      %s34 = scalar_select %p31, %s32, %s33
      %p37 = pneg %p31
      %p38 = scmp.eq.s32.totalorder %s22, 1
      %p39 = por %p37, %p38
      %p40 = scmp.ne.s32.totalorder %s32, %s35
      %p41 = scmp.eq.s32.totalorder %s22, 0
      %p42 = por %p40, %p41
      %p43 = scmp.ne.s32.totalorder %s32, %s35
      %p44 = scmp.eq.s32.totalorder %s27, 1
      %p45 = por %p43, %p44
      %p46 = scmp.ne.s32.totalorder %s35, %s36
      %p47 = scmp.eq.s32.totalorder %s27, 0
      %p48 = por %p46, %p47
      %p49 = scmp.ne.s32.totalorder %s35, %s36
      %p50 = scmp.eq.s32.totalorder %s28, 1
      %p51 = por %p49, %p50
      %p53 = scmp.ne.s32.totalorder %s36, %s52
      %p54 = scmp.eq.s32.totalorder %s28, 0
      %p55 = por %p53, %p54
      %s56 = ssub.s32 %s22, %s29
      %p57 = scmp.eq.s32.totalorder %s56, 0
      %s59 = sadd.s32 %s58, 1
      %s60 = scalar_select %p57, %s58, %s59
      %p63 = pneg %p57
      %p64 = scmp.eq.s32.totalorder %s22, 1
      %p65 = por %p63, %p64
      %p66 = scmp.ne.s32.totalorder %s58, %s61
      %p67 = scmp.eq.s32.totalorder %s22, 0
      %p68 = por %p66, %p67
      %p69 = scmp.ne.s32.totalorder %s58, %s61
      %p70 = scmp.eq.s32.totalorder %s27, 1
      %p71 = por %p69, %p70
      %p72 = scmp.ne.s32.totalorder %s61, %s62
      %p73 = scmp.eq.s32.totalorder %s27, 0
      %p74 = por %p72, %p73
      %p75 = scmp.ne.s32.totalorder %s61, %s62
      %p76 = scmp.eq.s32.totalorder %s28, 1
      %p77 = por %p75, %p76
      %p79 = scmp.ne.s32.totalorder %s62, %s78
      %p80 = scmp.eq.s32.totalorder %s28, 0
      %p81 = por %p79, %p80
      %s83 = sadd.s32 %s82, 1
      %p86 = scmp.eq.s32.totalorder %s22, 1
      %p87 = scmp.ne.s32.totalorder %s82, %s84
      %p88 = scmp.eq.s32.totalorder %s22, 0
      %p89 = por %p87, %p88
      %p90 = scmp.ne.s32.totalorder %s82, %s84
      %p91 = scmp.eq.s32.totalorder %s27, 1
      %p92 = por %p90, %p91
      %p93 = scmp.ne.s32.totalorder %s84, %s85
      %p94 = scmp.eq.s32.totalorder %s27, 0
      %p95 = por %p93, %p94
      %p96 = scmp.ne.s32.totalorder %s84, %s85
      %p97 = scmp.eq.s32.totalorder %s28, 1
      %p98 = por %p96, %p97
      %p100 = scmp.ne.s32.totalorder %s85, %s99
      %p101 = scmp.eq.s32.totalorder %s28, 0
      %p102 = por %p100, %p101
      %s104 = sadd.s32 %s103, 1
      %p107 = scmp.eq.s32.totalorder %s22, 1
      %p108 = scmp.ne.s32.totalorder %s103, %s105
      %p109 = scmp.eq.s32.totalorder %s22, 0
      %p110 = por %p108, %p109
      %p111 = scmp.ne.s32.totalorder %s103, %s105
      %p112 = scmp.eq.s32.totalorder %s27, 1
      %p113 = por %p111, %p112
      %p114 = scmp.ne.s32.totalorder %s105, %s106
      %p115 = scmp.eq.s32.totalorder %s27, 0
      %p116 = por %p114, %p115
      %p117 = scmp.ne.s32.totalorder %s105, %s106
      %p118 = scmp.eq.s32.totalorder %s28, 1
      %p119 = por %p117, %p118
      %p121 = scmp.ne.s32.totalorder %s106, %s120
      %p122 = scmp.eq.s32.totalorder %s28, 0
      %p123 = por %p121, %p122
      %s125 = sadd.s32 %s124, 1
      %p128 = scmp.eq.s32.totalorder %s22, 1
      %p129 = scmp.ne.s32.totalorder %s124, %s126
      %p130 = scmp.eq.s32.totalorder %s22, 0
      %p131 = por %p129, %p130
      %p132 = scmp.ne.s32.totalorder %s124, %s126
      %p133 = scmp.eq.s32.totalorder %s27, 1
      %p134 = por %p132, %p133
      %p135 = scmp.ne.s32.totalorder %s126, %s127
      %p136 = scmp.eq.s32.totalorder %s27, 0
      %p137 = por %p135, %p136
      %p138 = scmp.ne.s32.totalorder %s126, %s127
      %p139 = scmp.eq.s32.totalorder %s28, 1
      %p140 = por %p138, %p139
      %p142 = scmp.ne.s32.totalorder %s127, %s141
      %p143 = scmp.eq.s32.totalorder %s28, 0
      %p144 = por %p142, %p143
      %s146 = sadd.s32 %s145, 1
      %p149 = scmp.eq.s32.totalorder %s22, 1
      %p150 = scmp.ne.s32.totalorder %s145, %s147
      %p151 = scmp.eq.s32.totalorder %s22, 0
      %p152 = por %p150, %p151
      %p153 = scmp.ne.s32.totalorder %s145, %s147
      %p154 = scmp.eq.s32.totalorder %s27, 1
      %p155 = por %p153, %p154
      %p156 = scmp.ne.s32.totalorder %s147, %s148
      %p157 = scmp.eq.s32.totalorder %s27, 0
      %p158 = por %p156, %p157
      %p159 = scmp.ne.s32.totalorder %s147, %s148
      %p160 = scmp.eq.s32.totalorder %s28, 1
      %p161 = por %p159, %p160
      %p163 = scmp.ne.s32.totalorder %s148, %s162
      %p164 = scmp.eq.s32.totalorder %s28, 0
      %p165 = por %p163, %p164
      %s167 = sadd.s32 %s166, 1
      %p170 = scmp.eq.s32.totalorder %s22, 1
      %p171 = scmp.ne.s32.totalorder %s166, %s168
      %p172 = scmp.eq.s32.totalorder %s22, 0
      %p173 = por %p171, %p172
      %p174 = scmp.ne.s32.totalorder %s166, %s168
      %p175 = scmp.eq.s32.totalorder %s27, 1
      %p176 = por %p174, %p175
      %p177 = scmp.ne.s32.totalorder %s168, %s169
      %p178 = scmp.eq.s32.totalorder %s27, 0
      %p179 = por %p177, %p178
      %p180 = scmp.ne.s32.totalorder %s168, %s169
      %p181 = scmp.eq.s32.totalorder %s28, 1
      %p182 = por %p180, %p181
      %p184 = scmp.ne.s32.totalorder %s169, %s183
      %p185 = scmp.eq.s32.totalorder %s28, 0
      %p186 = por %p184, %p185
      %s187 = ssub.s32 %s22, %s29
      %p188 = scmp.eq.s32.totalorder %s187, 0
      %s190 = sadd.s32 %s189, 1
      %s191 = scalar_select %p188, %s189, %s190
      %p194 = pneg %p188
      %p195 = scmp.eq.s32.totalorder %s22, 1
      %p196 = por %p194, %p195
      %p197 = scmp.ne.s32.totalorder %s189, %s192
      %p198 = scmp.eq.s32.totalorder %s22, 0
      %p199 = por %p197, %p198
      %p200 = scmp.ne.s32.totalorder %s189, %s192
      %p201 = scmp.eq.s32.totalorder %s27, 1
      %p202 = por %p200, %p201
      %p203 = scmp.ne.s32.totalorder %s192, %s193
      %p204 = scmp.eq.s32.totalorder %s27, 0
      %p205 = por %p203, %p204
      %p206 = scmp.ne.s32.totalorder %s192, %s193
      %p207 = scmp.eq.s32.totalorder %s28, 1
      %p208 = por %p206, %p207
      %p210 = scmp.ne.s32.totalorder %s193, %s209
      %p211 = scmp.eq.s32.totalorder %s28, 0
      %p212 = por %p210, %p211
      %p213 = scmp.le.s32.totalorder 1, %s22
      %p214 = scmp.lt.s32.totalorder %s22, 3
      %p215 = pnand %p213, %p214
      %p216 = pneg %p215
      // Predicated region
      $region9: #{tpu_custom_call.1} parent=5 // pred_check
        _
      $region10: #{tpu_custom_call.1} parent=5 // pred_check_branch
        %218 = sbr.rel (%p215) target = $region12
      $region11: #{tpu_custom_call.1} parent=5 // pred_region
        %s219 = ssub.s32 %s22, 1
        // Predicated region
        $region13: #{tpu_custom_call.1} parent=11 // pred_check
          %p220 = pneg %p95
        $region14: #{tpu_custom_call.1} parent=11 // pred_check_branch
          %222 = sbr.rel (%p220) target = $region16
        $region15: #{tpu_custom_call.1} parent=11 // pred_region
          _
        $region16: #{tpu_custom_call.1} parent=11 // pred_fallthru
          _
        // Predicated region
        $region17: #{tpu_custom_call.1} parent=11 // pred_check
          %p223 = pneg %p116
        $region18: #{tpu_custom_call.1} parent=11 // pred_check_branch
          %225 = sbr.rel (%p223) target = $region20
        $region19: #{tpu_custom_call.1} parent=11 // pred_region
          _
        $region20: #{tpu_custom_call.1} parent=11 // pred_fallthru
          _
        // Predicated region
        $region21: #{tpu_custom_call.1} parent=11 // pred_check
          %p226 = pneg %p137
        $region22: #{tpu_custom_call.1} parent=11 // pred_check_branch
          %228 = sbr.rel (%p226) target = $region24
        $region23: #{tpu_custom_call.1} parent=11 // pred_region
          _
        $region24: #{tpu_custom_call.1} parent=11 // pred_fallthru
          _
        // Predicated region
        $region25: #{tpu_custom_call.1} parent=11 // pred_check
          %p229 = pneg %p158
        $region26: #{tpu_custom_call.1} parent=11 // pred_check_branch
          %231 = sbr.rel (%p229) target = $region28
        $region27: #{tpu_custom_call.1} parent=11 // pred_region
          _
        $region28: #{tpu_custom_call.1} parent=11 // pred_fallthru
          _
        // Predicated region
        $region29: #{tpu_custom_call.1} parent=11 // pred_check
          %p232 = pneg %p179
        $region30: #{tpu_custom_call.1} parent=11 // pred_check_branch
          %234 = sbr.rel (%p232) target = $region32
        $region31: #{tpu_custom_call.1} parent=11 // pred_region
          _
        $region32: #{tpu_custom_call.1} parent=11 // pred_fallthru
          _
      $region12: #{tpu_custom_call.1} parent=5 // pred_fallthru
        _
      %p235 = scmp.lt.s32.totalorder %s22, 2
      // Predicated region
      $region33: #{tpu_custom_call.1} parent=5 // pred_check
        %p236 = pneg %p235
      $region34: #{tpu_custom_call.1} parent=5 // pred_check_branch
        %238 = sbr.rel (%p236) target = $region36
      $region35: #{tpu_custom_call.1} parent=5 // pred_region
        // Predicated region
        $region37: #{tpu_custom_call.1} parent=35 // pred_check
          %p239 = pneg %p42
        $region38: #{tpu_custom_call.1} parent=35 // pred_check_branch
          %241 = sbr.rel (%p239) target = $region40
        $region39: #{tpu_custom_call.1} parent=35 // pred_region
          %s242 = sand.u32 %s32, 1
          %s243 = scalar_lea.sflag [#allocation3], %s242
          %s244 = sand.u32 %s32, 1
          %s245 = smul.addr %s244, 4
          %s246 = scalar_lea.vmem [#allocation2], %s245
          %248 = vsyncadd %s243, 0
          %s249 = smul.addr %s22, 4
          %s250 = scalar_lea.hbm %s0, %s249
          %s252 = sshll.u32 %s250, 4
          %s253 = int_to_ptr.hbm [resolvable:$true] %s252
          %s254 = sshll.u32 %s246, 4
          %s255 = int_to_ptr.vmem [resolvable:$true] %s254
          %257 = dma.hbm_to_vmem [thread:$0]  %s253, 64, %s255, %s243
        $region40: #{tpu_custom_call.1} parent=35 // pred_fallthru
          _
        // Predicated region
        $region41: #{tpu_custom_call.1} parent=35 // pred_check
          %p258 = pneg %p68
        $region42: #{tpu_custom_call.1} parent=35 // pred_check_branch
          %260 = sbr.rel (%p258) target = $region44
        $region43: #{tpu_custom_call.1} parent=35 // pred_region
          %s261 = sand.u32 %s58, 1
          %s262 = scalar_lea.sflag [#allocation6], %s261
          %s263 = sand.u32 %s58, 1
          %s264 = scalar_lea.vmem [#allocation5], %s263
          %266 = vsyncadd %s262, 0
          %s267 = scalar_lea.hbm %s1, %s22
          %s269 = sshll.u32 %s267, 4
          %s270 = int_to_ptr.hbm [resolvable:$true] %s269
          %s271 = sshll.u32 %s264, 4
          %s272 = int_to_ptr.vmem [resolvable:$true] %s271
          %274 = dma.hbm_to_vmem [thread:$0]  %s270, 16, %s272, %s262
        $region44: #{tpu_custom_call.1} parent=35 // pred_fallthru
          _
      $region36: #{tpu_custom_call.1} parent=5 // pred_fallthru
        _
      %p275 = scmp.le.s32.totalorder 1, %s22
      %p276 = scmp.lt.s32.totalorder %s22, 3
      %p277 = pnand %p275, %p276
      %p278 = pneg %p277
      // Predicated region
      $region45: #{tpu_custom_call.1} parent=5 // pred_check
        _
      $region46: #{tpu_custom_call.1} parent=5 // pred_check_branch
        %280 = sbr.rel (%p277) target = $region48
      $region47: #{tpu_custom_call.1} parent=5 // pred_region
        %s281 = ssub.s32 %s22, 1
        %s282 = sand.u32 %s35, 1
        %s283 = scalar_lea.sflag [#allocation3], %s282
        %s284 = sand.u32 %s35, 1
        %s285 = smul.addr %s284, 4
        %s286 = scalar_lea.vmem [#allocation2], %s285
        // Predicated region
        $region49: #{tpu_custom_call.1} parent=47 // pred_check
          %p287 = pneg %p48
        $region50: #{tpu_custom_call.1} parent=47 // pred_check_branch
          %289 = sbr.rel (%p287) target = $region52
        $region51: #{tpu_custom_call.1} parent=47 // pred_region
          %291 = dma.done %s283, 64
        $region52: #{tpu_custom_call.1} parent=47 // pred_fallthru
          _
        %s292 = sand.u32 %s61, 1
        %s293 = scalar_lea.sflag [#allocation6], %s292
        %s294 = sand.u32 %s61, 1
        %s295 = scalar_lea.vmem [#allocation5], %s294
        // Predicated region
        $region53: #{tpu_custom_call.1} parent=47 // pred_check
          %p296 = pneg %p74
        $region54: #{tpu_custom_call.1} parent=47 // pred_check_branch
          %298 = sbr.rel (%p296) target = $region56
        $region55: #{tpu_custom_call.1} parent=47 // pred_region
          %300 = dma.done %s293, 16
        $region56: #{tpu_custom_call.1} parent=47 // pred_fallthru
          _
        %s301 = sand.u32 %s35, 1
        %s302 = scalar_lea.sflag [#allocation3], %s301
        %s303 = sand.u32 %s35, 1
        %s304 = smul.addr %s303, 4
        %s305 = scalar_lea.vmem [#allocation2], %s304
        %p306 = pneg %p48
        %p307 = pneg %p45
        %s308 = sand.u32 %s61, 1
        %s309 = scalar_lea.sflag [#allocation6], %s308
        %s310 = sand.u32 %s61, 1
        %s311 = scalar_lea.vmem [#allocation5], %s310
        %p312 = pneg %p74
        %p313 = pneg %p71
        %p314 = pneg %p95
        %p315 = pneg %p92
        %p316 = pneg %p116
        %p317 = pneg %p113
        %p318 = pneg %p137
        %p319 = pneg %p134
        %p320 = pneg %p158
        %p321 = pneg %p155
        %p322 = pneg %p179
        %p323 = pneg %p176
        %p324 = pneg %p205
        %p325 = pneg %p202
        %s326 = sand.u32 %s192, 1
        %s327 = scalar_lea.sflag [#allocation4], %s326
        %s328 = sand.u32 %s192, 1
        %s329 = scalar_lea.vmem [#allocation7], %s328
        %v331 = vld [vmem:[%s286] sm:$0xf]
        %v332 = vld [vmem:[%s2] sm:$0xf]
        %v333 = vld [vmem:[%s2 + $0x4] sm:$0xf]
        %v334 = vld [vmem:[%s2 + $0x8] sm:$0xf]
        %v335 = vld [vmem:[%s2 + $0xc] sm:$0xf]
        %v340 = vunpack.c.l.b16 %v332
        %v341 = vunpack.c.l.b16 %v333
        %v342 = vunpack.c.l.b16 %v334
        %v343 = vunpack.c.l.b16 %v335
        %v344 = vpack.c.b16 %v341, %v340
        %v345 = vpack.c.b16 %v343, %v342
        %vm348 = vcmask 261120
        %v350 = vsel %vm348, %v331, 0
        %352 = vmatpush.bf16.msra.mxu0 0
        %353 = vmatpush.bf16.msra.mxu0 0
        %354 = vmatpush.bf16.msra.mxu0 0
        %355 = vmatpush.bf16.msra.mxu0 0
        %356 = vmatpush.bf16.msra.mxu0 0
        %357 = vmatpush.bf16.msra.mxu0 0
        %358 = vmatpush.bf16.msra.mxu0 %v345
        %359 = vmatpush.bf16.msra.mxu0 %v344
        %360 = vmatmul.bf16.gmra.mxu0 %v350
        %v361 = vpop.f32.mrf.mxu0
        %v362 = vadd.f32 0.0, %v361
        %v363 = vpop.f32.mrf.mxu0
        %364 = vdwg.mxu0
        %v365 = vpack.c.bf16 %v362, %v362
        %v366 = vld [vmem:[%s295] sm:$0x1]
        %v367 = vsub.f32 %v366, 1.0
        %v368 = vmul.f32 %v367, 1e+09
        %370 = vrot.lane.b32.xlu0 %v365, 96
        %v371 = vpop.permute.xlu0 %370
        %v373 = vsel %vm348, %v365, 0
        %v376 = vsel %vm348, %v371, 0
        %378 = vmatpush.bf16.xpose.msra.mxu0 0
        %379 = vmatpush.bf16.xpose.msra.mxu0 0
        %380 = vmatpush.bf16.xpose.msra.mxu0 0
        %381 = vmatpush.bf16.xpose.msra.mxu0 0
        %382 = vmatpush.bf16.xpose.msra.mxu0 0
        %383 = vmatpush.bf16.xpose.msra.mxu0 0
        %384 = vmatpush.bf16.xpose.msra.mxu0 0
        %385 = vmatpush.bf16.xpose.msra.mxu0 %v376
        %386 = vmatmul.bf16.gmra.mxu0 %v373
        %v387 = vpop.f32.mrf.mxu0
        %v388 = vadd.f32 %v368, %v387
        %v389 = vpop.f32.mrf.mxu0
        %390 = vdwg.mxu0
        %vm391 = vcmask 57344
        %v392 = vsel %vm391, %v388, -inf
        %393 = vmax.xlane.f32.xlu0 %v392
        %v394 = vpop.xlane.xlu0 %393
        %v395 = vsub.f32 %v388, %v394
        %v396 = vmul.f32 %v395, 1.442695
        %v397 = vpow.pop %v396
        %v398 = vsel %vm391, %v397, 0.0
        %399 = vadd.xlane.f32.xlu0 %v398
        %v400 = vpop.xlane.xlu0 %399
        %v401 = vrcp.pop %v400
        %v402 = vmul.f32 %v397, %v401
        %v403 = vpack.c.bf16 %v402, %v402
        %404 = vrot.lane.b32.xlu0 %v365, 64
        %v405 = vpop.permute.xlu0 %404
        %vm406 = vcmask 64512
        %v408 = vsel %vm406, %v403, 0
        %vm410 = vcmask 1043456
        %v412 = vsel %vm410, %v405, 0
        %414 = vmatpush.bf16.msra.mxu0 0
        %415 = vmatpush.bf16.msra.mxu0 0
        %416 = vmatpush.bf16.msra.mxu0 0
        %417 = vmatpush.bf16.msra.mxu0 0
        %418 = vmatpush.bf16.msra.mxu0 0
        %419 = vmatpush.bf16.msra.mxu0 0
        %420 = vmatpush.bf16.msra.mxu0 0
        %421 = vmatpush.bf16.msra.mxu0 %v412
        %422 = vmatmul.bf16.gmra.mxu0 %v408
        %v423 = vpop.f32.mrf.mxu0
        %v424 = vadd.f32 0.0, %v423
        %v425 = vpop.f32.mrf.mxu0
        %426 = vdwg.mxu0
        %v427 = vunpack.c.l.bf16 %v331
        %v428 = vadd.f32 %v427, %v424
        %vm429 = vcmask 253952
        %v430 = vsel %vm429, %v428, 0.0
        %431 = vadd.xlane.f32.xlu0 %v430
        %v432 = vpop.xlane.xlu0 %431
        %v433 = vrcp.pop 32.0
        %v434 = vmul.f32 32.0, %v433
        %v435 = vsub.f32 1.0, %v434
        %v436 = vmul.f32 %v433, %v435
        %v437 = vadd.f32 %v433, %v436
        %vm438 = vweird.f32 %v433
        %v439 = vsel %vm438, %v433, %v437
        %v440 = vmul.f32 %v432, %v439
        %v441 = vsub.f32 %v428, %v440
        %v442 = vmul.f32 %v441, %v441
        %v443 = vsel %vm429, %v442, 0.0
        %444 = vadd.xlane.f32.xlu0 %v443
        %v445 = vpop.xlane.xlu0 %444
        %v446 = vmul.f32 %v445, %v439
        %v447 = vadd.f32 %v446, 1e-06
        %v448 = vrsqrt.pop %v447
        %v449 = vmul.f32 %v448, %v447
        %v450 = vmul.f32 %v449, %v448
        %v451 = vmul.f32 0.5, %v450
        %v452 = vsub.f32 1.5, %v451
        %v453 = vmul.f32 %v448, %v452
        %vm454 = vweird.f32 %v447
        %vm455 = vweird.f32 %v448
        %vm456 = vmor %vm454, %vm455
        %v457 = vsel %vm456, %v448, %v453
        %v458 = vmul.f32 %v441, %v457
        %v459 = vld [vmem:[%s6] sm:$0x1]
        %v460 = vld [vmem:[%s6 + $0x1] sm:$0x1]
        %v461 = vpack.c.bf16 %v458, %v458
        %v462 = vld [vmem:[%s3] sm:$0xf]
        %v463 = vld [vmem:[%s3 + $0x4] sm:$0xf]
        %v464 = vld [vmem:[%s3 + $0x8] sm:$0xf]
        %v465 = vld [vmem:[%s3 + $0xc] sm:$0xf]
        %v470 = vunpack.c.l.b16 %v462
        %v471 = vunpack.c.l.b16 %v463
        %v472 = vunpack.c.l.b16 %v464
        %v473 = vunpack.c.l.b16 %v465
        %v474 = vpack.c.b16 %v471, %v470
        %v475 = vpack.c.b16 %v473, %v472
        %v479 = vsel %vm348, %v461, 0
        %481 = vmatpush.bf16.msra.mxu0 0
        %482 = vmatpush.bf16.msra.mxu0 0
        %483 = vmatpush.bf16.msra.mxu0 0
        %484 = vmatpush.bf16.msra.mxu0 0
        %485 = vmatpush.bf16.msra.mxu0 0
        %486 = vmatpush.bf16.msra.mxu0 0
        %487 = vmatpush.bf16.msra.mxu0 %v475
        %488 = vmatpush.bf16.msra.mxu0 %v474
        %489 = vmatmul.bf16.gmra.mxu0 %v479
        %v490 = vpop.f32.mrf.mxu0
        %v491 = vadd.f32 %v460, %v490
        %v492 = vpop.f32.mrf.mxu0
        %493 = vdwg.mxu0
        %v494 = vmul.f32 %v491, %v491
        %v495 = vmul.f32 %v491, %v494
        %v496 = vmul.f32 %v495, 0.044715
        %v497 = vadd.f32 %v491, %v496
        %v498 = vmul.f32 %v497, 0.7978846
        %v499 = vtanh.pop %v498
        %v500 = vadd.f32 %v499, 1.0
        %v501 = vmul.f32 %v500, 0.5
        %v502 = vmul.f32 %v491, %v501
        %v503 = vpack.c.bf16 %v502, %v502
        %v504 = vld [vmem:[%s4] sm:$0xf]
        %v505 = vld [vmem:[%s4 + $0x4] sm:$0xf]
        %v506 = vld [vmem:[%s4 + $0x8] sm:$0xf]
        %v507 = vld [vmem:[%s4 + $0xc] sm:$0xf]
        %v508 = vld [vmem:[%s4 + $0x10] sm:$0xf]
        %v509 = vld [vmem:[%s4 + $0x14] sm:$0xf]
        %v510 = vld [vmem:[%s4 + $0x18] sm:$0xf]
        %v511 = vld [vmem:[%s4 + $0x1c] sm:$0xf]
        %v520 = vunpack.c.l.b16 %v504
        %v521 = vunpack.c.l.b16 %v505
        %v522 = vunpack.c.l.b16 %v506
        %v523 = vunpack.c.l.b16 %v507
        %v524 = vunpack.c.l.b16 %v508
        %v525 = vunpack.c.l.b16 %v509
        %v526 = vunpack.c.l.b16 %v510
        %v527 = vunpack.c.l.b16 %v511
        %v528 = vpack.c.b16 %v521, %v520
        %v529 = vpack.c.b16 %v523, %v522
        %v530 = vpack.c.b16 %v525, %v524
        %v531 = vpack.c.b16 %v527, %v526
        %v537 = vperm.slane %v460, 0
        %538 = vrot.lane.b32.xlu0 %v537, 64
        %v539 = vpop.permute.xlu0 %538
        %vm541 = vcmask 523264
        %v543 = vsel %vm541, %v503, 0
        %545 = vmatpush.bf16.msra.mxu0 0
        %546 = vmatpush.bf16.msra.mxu0 0
        %547 = vmatpush.bf16.msra.mxu0 0
        %548 = vmatpush.bf16.msra.mxu0 0
        %549 = vmatpush.bf16.msra.mxu0 %v531
        %550 = vmatpush.bf16.msra.mxu0 %v530
        %551 = vmatpush.bf16.msra.mxu0 %v529
        %552 = vmatpush.bf16.msra.mxu0 %v528
        %553 = vmatmul.bf16.gmra.mxu0 %v543
        %v554 = vpop.f32.mrf.mxu0
        %v555 = vadd.f32 %v539, %v554
        %v556 = vpop.f32.mrf.mxu0
        %557 = vdwg.mxu0
        %v558 = vadd.f32 %v458, %v555
        %v559 = vsel %vm429, %v558, 0.0
        %560 = vadd.xlane.f32.xlu0 %v559
        %v561 = vpop.xlane.xlu0 %560
        %v562 = vmul.f32 %v561, %v439
        %v563 = vsub.f32 %v558, %v562
        %v564 = vmul.f32 %v563, %v563
        %v565 = vsel %vm429, %v564, 0.0
        %566 = vadd.xlane.f32.xlu0 %v565
        %v567 = vpop.xlane.xlu0 %566
        %v568 = vmul.f32 %v567, %v439
        %v569 = vadd.f32 %v568, 1e-06
        %v570 = vrsqrt.pop %v569
        %v571 = vmul.f32 %v570, %v569
        %v572 = vmul.f32 %v571, %v570
        %v573 = vmul.f32 0.5, %v572
        %v574 = vsub.f32 1.5, %v573
        %v575 = vmul.f32 %v570, %v574
        %vm576 = vweird.f32 %v569
        %vm577 = vweird.f32 %v570
        %vm578 = vmor %vm576, %vm577
        %v579 = vsel %vm578, %v570, %v575
        %v580 = vmul.f32 %v563, %v579
        %v581 = vpack.c.bf16 %v580, %v580
        %v582 = vld [vmem:[%s5] sm:$0xf]
        %v583 = vld [vmem:[%s5 + $0x4] sm:$0xf]
        %v584 = vld [vmem:[%s5 + $0x8] sm:$0xf]
        %v585 = vld [vmem:[%s5 + $0xc] sm:$0xf]
        %v590 = vunpack.c.l.b16 %v582
        %v591 = vunpack.c.l.b16 %v583
        %v592 = vunpack.c.l.b16 %v584
        %v593 = vunpack.c.l.b16 %v585
        %v594 = vpack.c.b16 %v591, %v590
        %v595 = vpack.c.b16 %v593, %v592
        %v599 = vsel %vm348, %v581, 0
        %601 = vmatpush.bf16.msra.mxu0 0
        %602 = vmatpush.bf16.msra.mxu0 0
        %603 = vmatpush.bf16.msra.mxu0 0
        %604 = vmatpush.bf16.msra.mxu0 0
        %605 = vmatpush.bf16.msra.mxu0 0
        %606 = vmatpush.bf16.msra.mxu0 0
        %607 = vmatpush.bf16.msra.mxu0 %v595
        %608 = vmatpush.bf16.msra.mxu0 %v594
        %609 = vmatmul.bf16.gmra.mxu0 %v599
        %v610 = vpop.f32.mrf.mxu0
        %v611 = vadd.f32 %v459, %v610
        %v612 = vpop.f32.mrf.mxu0
        %613 = vdwg.mxu0
        %vm614 = vcmask 1040384
        %v615 = vsel %vm614, %v611, -inf
        %616 = vmax.xlane.f32.xlu0 %v615
        %v617 = vpop.xlane.xlu0 %616
        %v618 = vsub.f32 %v611, %v617
        %v619 = vmul.f32 %v618, 1.442695
        %v620 = vpow.pop %v619
        %v621 = vsel %vm614, %v620, 0.0
        %622 = vadd.xlane.f32.xlu0 %v621
        %v623 = vpop.xlane.xlu0 %622
        %v624 = vrcp.pop %v623
        %v625 = vmul.f32 %v623, %v624
        %v626 = vsub.f32 1.0, %v625
        %v627 = vmul.f32 %v624, %v626
        %v628 = vadd.f32 %v624, %v627
        %vm629 = vweird.f32 %v623
        %vm630 = vweird.f32 %v624
        %vm631 = vmor %vm629, %vm630
        %v632 = vsel %vm631, %v624, %v628
        %v633 = vand.u32 2147483647, %v623
        %vm634 = vcmp.eq.f32.partialorder %v633, 8.507059e+37
        %v635 = vand.u32 %v623, 2147483648
        %v636 = vor.u32 1.1754944e-38, %v635
        %v637 = vsel %vm634, %v636, %v632
        %v638 = vmul.f32 %v620, %v637
        %639 = vst [vmem:[%s329] sm:$0x1] %v638
        %s640 = sand.u32 %s192, 1
        %s641 = scalar_lea.sflag [#allocation4], %s640
        %s642 = sand.u32 %s192, 1
        %s643 = scalar_lea.vmem [#allocation7], %s642
        // Predicated region
        $region57: #{tpu_custom_call.1} parent=47 // pred_check
          %p644 = pneg %p202
        $region58: #{tpu_custom_call.1} parent=47 // pred_check_branch
          %646 = sbr.rel (%p644) target = $region60
        $region59: #{tpu_custom_call.1} parent=47 // pred_region
          %648 = vsyncadd %s641, 0
          %s649 = scalar_lea.hbm %s7, %s27
          %s651 = sshll.u32 %s643, 4
          %s652 = int_to_ptr.vmem [resolvable:$true] %s651
          %s653 = sshll.u32 %s649, 4
          %s654 = int_to_ptr.hbm [resolvable:$true] %s653
          %656 = dma.vmem_to_hbm [thread:$0]  %s652, 16, %s654, %s641
        $region60: #{tpu_custom_call.1} parent=47 // pred_fallthru
          _
      $region48: #{tpu_custom_call.1} parent=5 // pred_fallthru
        _
      %p657 = scmp.le.s32.totalorder 2, %s22
      // Predicated region
      $region61: #{tpu_custom_call.1} parent=5 // pred_check
        %p658 = pneg %p657
      $region62: #{tpu_custom_call.1} parent=5 // pred_check_branch
        %660 = sbr.rel (%p658) target = $region64
      $region63: #{tpu_custom_call.1} parent=5 // pred_region
        %s661 = ssub.s32 %s22, 2
        // Predicated region
        $region65: #{tpu_custom_call.1} parent=63 // pred_check
          %p662 = pneg %p208
        $region66: #{tpu_custom_call.1} parent=63 // pred_check_branch
          %664 = sbr.rel (%p662) target = $region68
        $region67: #{tpu_custom_call.1} parent=63 // pred_region
          %s665 = sand.u32 %s193, 1
          %s666 = scalar_lea.sflag [#allocation4], %s665
          %s667 = sand.u32 %s193, 1
          %s668 = scalar_lea.vmem [#allocation7], %s667
          %670 = dma.done %s666, 16
        $region68: #{tpu_custom_call.1} parent=63 // pred_fallthru
          _
      $region64: #{tpu_custom_call.1} parent=5 // pred_fallthru
        _
    $region6: #{tpu_custom_call.1} parent=1 // loop_footer
      %s26 = sadd.s32 1, %s22
    $region7: #{tpu_custom_call.1} parent=1 // loop_footer_branch
      %21 = sbr.rel target = $region3
    $region8: #{tpu_custom_call.1} parent=1 // loop_exit
      _
    %671 = vsyncpa [#allocation3], 1
    %s672 = scalar_lea.sflag [#allocation3], 1
    %673 = vsyncpa %s672, 1
    %674 = vsyncpa [#allocation6], 1
    %s675 = scalar_lea.sflag [#allocation6], 1
    %676 = vsyncpa %s675, 1
    %677 = vsyncpa [#allocation4], 1
    %s678 = scalar_lea.sflag [#allocation4], 1
    %679 = vsyncpa %s678, 1

</llo_original>
